<compile_context>
chip_gen: v5e
topology: v5e:2x2
jax: 0.10.0
libtpu: 0.0.40
codegen_flags: <defaults>
</compile_context>

<pallas_src>
import functools

import jax
import jax.numpy as jnp
from jax.experimental import pallas as pl
from jax.experimental.pallas import tpu as pltpu

LANES = 128
MAX_ROW_TILE = 2048      # 2048 x 128 f32 = 1 MiB per block
MIN_SHARD_ROWS = 1024    # don't split across TensorCores below this many rows/core


def _round_up(x: int, m: int) -> int:
    return -(-x // m) * m


def _round_down(x: int, m: int) -> int:
    return (x // m) * m


def _sublane_pack(dtype) -> int:
    # Sublane packing of a VMEM tile: 8 for 4-byte, 16 for 2-byte, 32 for
    # 1-byte dtypes.  row_tile is kept a multiple of this so bf16/int8/fp8
    # inputs stream in their native (halved/quartered) HBM footprint.
    return {4: 8, 2: 16, 1: 32}.get(jnp.dtype(dtype).itemsize, 8)


def _num_tensorcores() -> int:
    # Best-effort TensorCores-per-device query (2 on v7x / megacore parts).
    # Falls back to 1, which is also the right answer for v5e/v6e.
    try:
        dev = jax.devices()[0]
    except Exception:
        return 1
    for attr in ("num_cores", "core_count"):
        n = getattr(dev, attr, None)
        if isinstance(n, int) and 1 <= n <= 8:
            return n
    return 1


def _masked_mse_kernel(pred_ref, target_ref, sum_ref, cnt_ref, *,
                       bps, row_tile, valid_rows, needs_row_mask):
    i = pl.program_id(1)

    # Output accumulator blocks are resident across the (last, "arbitrary")
    # reduction axis; zero them on the first step of each shard.
    @pl.when(i == 0)
    def _():
        sum_ref[...] = jnp.zeros_like(sum_ref)
        cnt_ref[...] = jnp.zeros_like(cnt_ref)

    # Cast in-kernel (inputs stay in their native dtype in HBM).
    t = target_ref[...].astype(jnp.float32)          # (row_tile, 128)
    p = pred_ref[...].astype(jnp.float32)
    valid = t > 0.0

    if needs_row_mask:
        # Partial / over-covered blocks: mask on the *global* row index so
        # undefined rows of a boundary block (or a clamped duplicate block)
        # contribute nothing to either the sum or the count.
        blk = pl.program_id(0) * bps + i             # unclamped global block idx
        row0 = blk * row_tile
        row_ids = row0 + jax.lax.broadcasted_iota(jnp.int32, t.shape, 0)
        valid = jnp.logical_and(valid, row_ids < valid_rows)

    d = jnp.where(valid, t - p, 0.0)
    rt = t.shape[0]
    # Fold (row_tile, 128) -> (8, 128): vreg-aligned reshape + leading-axis sum
    # (pure VPU adds, no XLU work in the hot loop).
    sum_ref[...] += (d * d).reshape(rt // 8, 8, LANES).sum(axis=0)
    cnt_ref[...] += jnp.where(valid, 1.0, 0.0).reshape(rt // 8, 8, LANES).sum(axis=0)


def _masked_mse_sums_jnp(pred_flat, target_flat):
    t = target_flat.astype(jnp.float32)
    p = pred_flat.astype(jnp.float32)
    m = t > 0.0
    d = jnp.where(m, t - p, 0.0)
    return jnp.sum(d * d), jnp.sum(m.astype(jnp.float32))


def masked_mse_loss(pred: jax.Array, target: jax.Array) -> jax.Array:
    assert pred.ndim == target.ndim, "inconsistent dimensions"
    assert pred.shape == target.shape, "inconsistent dimensions"

    n = pred.size
    row_align = max(_sublane_pack(pred.dtype), _sublane_pack(target.dtype))
    rows = n // LANES                 # full 128-lane rows
    tail = n - rows * LANES           # 0..127 ragged elements

    pred_f = pred.reshape(-1)         # metadata-only flatten
    target_f = target.reshape(-1)

    if rows < row_align:
        # Tiny input: a kernel launch isn't worth it.
        s, c = _masked_mse_sums_jnp(pred_f, target_f)
        return s / c

    tail_sum = tail_cnt = None
    if tail:
        # TODO(synk): a 1-D-blocked (or manual-DMA) kernel would make this
        # ragged path zero-copy too; the prefix slice below still copies ~n
        # elements once.  The common numel % 128 == 0 case below is zero-copy.
        main_p = pred_f[: rows * LANES]
        main_t = target_f[: rows * LANES]
        tail_sum, tail_cnt = _masked_mse_sums_jnp(pred_f[rows * LANES:],
                                                  target_f[rows * LANES:])
    else:
        main_p, main_t = pred_f, target_f            # zero-copy path

    pred2d = main_p.reshape(rows, LANES)             # metadata-only reshape
    target2d = main_t.reshape(rows, LANES)

    # ---- grid / tile selection -------------------------------------------
    cores = _num_tensorcores()
    shards = cores if (cores > 1 and rows >= cores * MIN_SHARD_ROWS) else 1

    rps = pl.cdiv(rows, shards)                      # logical rows per shard
    bps0 = pl.cdiv(rps, MAX_ROW_TILE)                # minimum blocks per shard
    row_tile = _round_up(pl.cdiv(rps, bps0), row_align)
    row_tile = max(row_align, min(row_tile, _round_down(rows, row_align)))
    total_blocks = pl.cdiv(rows, row_tile)           # blocks that touch valid rows
    bps = pl.cdiv(total_blocks, shards)              # grid blocks per shard
    needs_row_mask = (shards * bps * row_tile) != rows

    kernel = functools.partial(
        _masked_mse_kernel,
        bps=bps, row_tile=row_tile, valid_rows=rows, needs_row_mask=needs_row_mask)

    def in_map(c, i):
        # Clamp so a DMA window never *starts* out of bounds; duplicated
        # (clamped) blocks are fully masked inside the kernel.
        return (jnp.minimum(c * bps + i, total_blocks - 1), 0)

    out_bytes = 2 * shards * 8 * LANES * 4
    cost = pl.CostEstimate(
        flops=7 * rows * LANES,
        transcendentals=0,
        bytes_accessed=rows * LANES * (pred.dtype.itemsize + target.dtype.itemsize)
        + out_bytes,
    )

    sum_partial, cnt_partial = pl.pallas_call(
        kernel,
        out_shape=(
            jax.ShapeDtypeStruct((shards * 8, LANES), jnp.float32),
            jax.ShapeDtypeStruct((shards * 8, LANES), jnp.float32),
        ),
        grid_spec=pltpu.PrefetchScalarGridSpec(
            num_scalar_prefetch=0,
            grid=(shards, bps),
            in_specs=[
                pl.BlockSpec((row_tile, LANES), in_map),
                pl.BlockSpec((row_tile, LANES), in_map),
            ],
            out_specs=[
                pl.BlockSpec((8, LANES), lambda c, i: (c, 0)),
                pl.BlockSpec((8, LANES), lambda c, i: (c, 0)),
            ],
        ),
        compiler_params=pltpu.CompilerParams(
            # TODO(synk): on v7x, verify via xprof that this axis actually lands
            # on both TensorCores; if not, switch it to pltpu.CORE_PARALLEL.
            dimension_semantics=("parallel", "arbitrary"),
        ),
        cost_estimate=cost,
    )(pred2d, target2d)

    total_sum = jnp.sum(sum_partial)
    total_cnt = jnp.sum(cnt_partial)
    if tail:
        total_sum = total_sum + tail_sum
        total_cnt = total_cnt + tail_cnt
    # Mean over an empty selection is NaN, matching the torch module.
    return total_sum / total_cnt


def masked_mse_loss_ref(pred, target):
    t = target.astype(jnp.float32)
    p = pred.astype(jnp.float32)
    mask = t > 0
    diff = jnp.where(mask, t - p, 0.0)
    return jnp.sum(diff * diff) / jnp.sum(mask.astype(jnp.float32))


if __name__ == "__main__":
    key = jax.random.PRNGKey(0)
    keys = jax.random.split(key, 6)

    # Case 1: 128-divisible NCHW shape -> zero-copy, single full block, no mask.
    shape = (2, 4, 16, 16)  # N, C, H, W
    pred = jax.random.normal(keys[0], shape, dtype=jnp.float32)
    target = jax.random.normal(keys[1], shape, dtype=jnp.float32)
    loss = jax.block_until_ready(masked_mse_loss(pred, target))
    ref = jax.block_until_ready(masked_mse_loss_ref(pred, target))
    assert jnp.allclose(loss, ref, rtol=1e-5, atol=1e-6), (loss, ref)

    # Case 2: ragged element count -> kernel on the 128-aligned prefix with a
    # masked partial last block, <128-element tail folded in the wrapper.
    shape2 = (3, 5, 7, 11)
    pred2 = jax.random.normal(keys[2], shape2, dtype=jnp.float32)
    target2 = jax.random.normal(keys[3], shape2, dtype=jnp.float32)
    loss2 = jax.block_until_ready(masked_mse_loss(pred2, target2))
    ref2 = jax.block_until_ready(masked_mse_loss_ref(pred2, target2))
    assert jnp.allclose(loss2, ref2, rtol=1e-5, atol=1e-6), (loss2, ref2)

    # Case 3: 128-divisible but not tile-divisible -> zero-copy, multi-block
    # accumulation with an in-kernel-masked partial last block.
    shape3 = (2, 3, 200, 224)
    pred3 = jax.random.normal(keys[4], shape3, dtype=jnp.float32)
    target3 = jax.random.normal(keys[5], shape3, dtype=jnp.float32)
    loss3 = jax.block_until_ready(masked_mse_loss(pred3, target3))
    ref3 = jax.block_until_ready(masked_mse_loss_ref(pred3, target3))
    # Looser rtol: f32 accumulation order differs from the XLA reference sum.
    assert jnp.allclose(loss3, ref3, rtol=1e-4, atol=1e-6), (loss3, ref3)

    print("KERNEL_OK")
</pallas_src>

<mosaic_0001>
module attributes {stable_mosaic.version = 11 : i64} {
  func.func @_masked_mse_kernel(%arg0: i32, %arg1: i32, %arg2: memref<16x128xf32, #tpu.memory_space<vmem>>, %arg3: memref<16x128xf32, #tpu.memory_space<vmem>>, %arg4: memref<8x128xf32, #tpu.memory_space<vmem>>, %arg5: memref<8x128xf32, #tpu.memory_space<vmem>>) attributes {dimension_semantics = [#tpu.dimension_semantics<parallel>, #tpu.dimension_semantics<arbitrary>], iteration_bounds = array<i64: 1, 1>, scalar_prefetch = 0 : i64, scratch_operands = 0 : i64, tpu.core_type = #tpu.core_type<tc>, window_params = [{transform_indices = @transform_0, window_bounds = array<i64: 16, 128>}, {transform_indices = @transform_1, window_bounds = array<i64: 16, 128>}, {transform_indices = @transform_2, window_bounds = array<i64: 8, 128>}, {transform_indices = @transform_3, window_bounds = array<i64: 8, 128>}]} {
    %c0_i32 = arith.constant 0 : i32
    %0 = arith.cmpi eq, %arg1, %c0_i32 : i32
    %1 = arith.extui %0 : i1 to i32
    %c0_i32_0 = arith.constant 0 : i32
    %2 = arith.cmpi ne, %1, %c0_i32_0 : i32
    scf.if %2 {
      %cst_17 = arith.constant 0.000000e+00 : f32
      %24 = vector.broadcast %cst_17 : f32 to vector<8x128xf32>
      %c0_18 = arith.constant 0 : index
      %c0_19 = arith.constant 0 : index
      %25 = vector.load %arg4[%c0_18, %c0_19] : memref<8x128xf32, #tpu.memory_space<vmem>>, vector<8x128xf32>
      tpu.vector_store %arg4[%c0_18, %c0_19], %24 {strides = array<i32>} : memref<8x128xf32, #tpu.memory_space<vmem>>, vector<8x128xf32>,
      %cst_20 = arith.constant 0.000000e+00 : f32
      %26 = vector.broadcast %cst_20 : f32 to vector<8x128xf32>
      %c0_21 = arith.constant 0 : index
      %c0_22 = arith.constant 0 : index
      %27 = vector.load %arg5[%c0_21, %c0_22] : memref<8x128xf32, #tpu.memory_space<vmem>>, vector<8x128xf32>
      tpu.vector_store %arg5[%c0_21, %c0_22], %26 {strides = array<i32>} : memref<8x128xf32, #tpu.memory_space<vmem>>, vector<8x128xf32>,
    } else {
    }
    %c0 = arith.constant 0 : index
    %c0_1 = arith.constant 0 : index
    %3 = vector.load %arg3[%c0, %c0_1] : memref<16x128xf32, #tpu.memory_space<vmem>>, vector<16x128xf32>
    %c0_2 = arith.constant 0 : index
    %c0_3 = arith.constant 0 : index
    %4 = vector.load %arg2[%c0_2, %c0_3] : memref<16x128xf32, #tpu.memory_space<vmem>>, vector<16x128xf32>
    %cst = arith.constant 0.000000e+00 : f32
    %5 = vector.broadcast %cst : f32 to vector<16x128xf32>
    %6 = arith.cmpf ogt, %3, %5 : vector<16x128xf32>
    %7 = arith.subf %3, %4 : vector<16x128xf32>
    %cst_4 = arith.constant 0.000000e+00 : f32
    %8 = vector.broadcast %cst_4 : f32 to vector<16x128xf32>
    %9 = arith.select %6, %7, %8 : vector<16x128xi1>, vector<16x128xf32>
    %c0_5 = arith.constant 0 : index
    %c0_6 = arith.constant 0 : index
    %10 = vector.load %arg4[%c0_5, %c0_6] : memref<8x128xf32, #tpu.memory_space<vmem>>, vector<8x128xf32>
    %11 = arith.mulf %9, %9 : vector<16x128xf32>
    %12 = vector.shape_cast %11 : vector<16x128xf32> to vector<2x8x128xf32>
    %cst_7 = arith.constant dense<0.000000e+00> : vector<8x128xf32>
    %13 = vector.multi_reduction <add>, %12, %cst_7 [0] : vector<2x8x128xf32> to vector<8x128xf32>
    %14 = arith.addf %10, %13 : vector<8x128xf32>
    %c0_8 = arith.constant 0 : index
    %c0_9 = arith.constant 0 : index
    %15 = vector.load %arg4[%c0_8, %c0_9] : memref<8x128xf32, #tpu.memory_space<vmem>>, vector<8x128xf32>
    tpu.vector_store %arg4[%c0_8, %c0_9], %14 {strides = array<i32>} : memref<8x128xf32, #tpu.memory_space<vmem>>, vector<8x128xf32>,
    %c0_10 = arith.constant 0 : index
    %c0_11 = arith.constant 0 : index
    %16 = vector.load %arg5[%c0_10, %c0_11] : memref<8x128xf32, #tpu.memory_space<vmem>>, vector<8x128xf32>
    %cst_12 = arith.constant 1.000000e+00 : f32
    %cst_13 = arith.constant 0.000000e+00 : f32
    %17 = vector.broadcast %cst_12 : f32 to vector<16x128xf32>
    %18 = vector.broadcast %cst_13 : f32 to vector<16x128xf32>
    %19 = arith.select %6, %17, %18 : vector<16x128xi1>, vector<16x128xf32>
    %20 = vector.shape_cast %19 : vector<16x128xf32> to vector<2x8x128xf32>
    %cst_14 = arith.constant dense<0.000000e+00> : vector<8x128xf32>
    %21 = vector.multi_reduction <add>, %20, %cst_14 [0] : vector<2x8x128xf32> to vector<8x128xf32>
    %22 = arith.addf %16, %21 : vector<8x128xf32>
    %c0_15 = arith.constant 0 : index
    %c0_16 = arith.constant 0 : index
    %23 = vector.load %arg5[%c0_15, %c0_16] : memref<8x128xf32, #tpu.memory_space<vmem>>, vector<8x128xf32>
    tpu.vector_store %arg5[%c0_15, %c0_16], %22 {strides = array<i32>} : memref<8x128xf32, #tpu.memory_space<vmem>>, vector<8x128xf32>,
    return
  }
  func.func @transform_0(%arg0: i32, %arg1: i32) -> (i32, i32) {
    %c1_i32 = arith.constant 1 : i32
    %0 = arith.muli %arg0, %c1_i32 : i32
    %1 = arith.addi %0, %arg1 : i32
    %c0_i32 = arith.constant 0 : i32
    %2 = arith.minsi %1, %c0_i32 : i32
    %c0_i32_0 = arith.constant 0 : i32
    %c0_i32_1 = arith.constant 0 : i32
    return %2, %c0_i32_0 : i32, i32
  }
  func.func @transform_1(%arg0: i32, %arg1: i32) -> (i32, i32) {
    %c1_i32 = arith.constant 1 : i32
    %0 = arith.muli %arg0, %c1_i32 : i32
    %1 = arith.addi %0, %arg1 : i32
    %c0_i32 = arith.constant 0 : i32
    %2 = arith.minsi %1, %c0_i32 : i32
    %c0_i32_0 = arith.constant 0 : i32
    %c0_i32_1 = arith.constant 0 : i32
    return %2, %c0_i32_0 : i32, i32
  }
  func.func @transform_2(%arg0: i32, %arg1: i32) -> (i32, i32) {
    %c0_i32 = arith.constant 0 : i32
    %c0_i32_0 = arith.constant 0 : i32
    return %arg0, %c0_i32 : i32, i32
  }
  func.func @transform_3(%arg0: i32, %arg1: i32) -> (i32, i32) {
    %c0_i32 = arith.constant 0 : i32
    %c0_i32_0 = arith.constant 0 : i32
    return %arg0, %c0_i32 : i32, i32
  }
}

</mosaic_0001>

<llo_original>
// kernel: tpu_custom_call.1
$region0: #{tpu_custom_call.1}
  #allocation0 [shape = 'u32[]', space=smem, size = 0x4, offset = 0x4, fixed_abs, tag = 'smem constant byte address 0x4 - core index']
  #allocation1 [shape = 'u32[72,128]{1,0:T(1,128)}', space=vmem, size = 0x9000, scoped, tag = 'internal scratch']
  %s0 = inlined_call_operand.hbm [shape: f32[16,128], index: 0, kind: input, shape index: {}]
  %s1 = inlined_call_operand.hbm [shape: f32[16,128], index: 1, kind: input, shape index: {}]
  %s2 = inlined_call_operand.hbm [shape: f32[8,128], index: 2, kind: output, shape index: {0}]
  %s3 = inlined_call_operand.hbm [shape: f32[8,128], index: 3, kind: output, shape index: {1}]
  %4 = xla_tuple %s2, %s3
  %s5 = sld [smem:[#allocation0]]
  $region38: #{tpu_custom_call.1} parent=0
    _
  %s7 = ssub.s32 1, %s5
  %s8 = scalar_select 0, %s7, %s5
  $region1: #{tpu_custom_call.1} parent=0
    #allocation2 [shape = 'u8[8192]{0}', space=vmem, size = 0x2000, scoped, tag = 'input window, operand 0, single buffered']
    #allocation3 [shape = 's32[1]{0}', space=sflag, size = 0x4, scoped, tag = 'scoped memory for tpu_custom_call.1']
    #allocation4 [shape = 's32[1]{0}', space=sflag, size = 0x4, scoped, tag = 'scoped memory for tpu_custom_call.1']
    #allocation5 [shape = 'u8[8192]{0}', space=vmem, size = 0x2000, scoped, tag = 'input window, operand 1, single buffered']
    #allocation6 [shape = 's32[1]{0}', space=sflag, size = 0x4, scoped, tag = 'scoped memory for tpu_custom_call.1']
    #allocation7 [shape = 'u8[4096]{0}', space=vmem, size = 0x1000, scoped, tag = 'output window, operand 0, single buffered']
    #allocation8 [shape = 'u8[4096]{0}', space=vmem, size = 0x1000, scoped, tag = 'output window, operand 1, single buffered']
    #allocation9 [shape = 's32[1]{0}', space=sflag, size = 0x4, scoped, tag = 'scoped memory for tpu_custom_call.1']
    %9 = vsyncpa [#allocation3], 0
    %10 = vsyncpa [#allocation6], 0
    %11 = vsyncpa [#allocation4], 0
    %12 = vsyncpa [#allocation9], 0
    // Predicated region
    $region2: #{tpu_custom_call.1} parent=1 // pred_check
      _
    $region3: #{tpu_custom_call.1} parent=1 // pred_check_branch
      %14 = sbr.rel (0) target = $region5
    $region4: #{tpu_custom_call.1} parent=1 // pred_region
      %s15 = sadd.s32 0, 0
      %p16 = scmp.lt.s32.totalorder %s15, 0
      %s17 = scalar_select %p16, %s15, 0
      %s18 = smul.u32 2, %s17
      %20 = vsyncadd [#allocation3], 0
      %s21 = smul.addr %s18, 8
      %s22 = scalar_lea.hbm %s0, %s21
      %s23 = sshll.u32 %s22, 4
      %s24 = int_to_ptr.hbm [resolvable:$true] %s23
      %s25 = sshll.u32 [#allocation2], 4
      %s26 = int_to_ptr.vmem [resolvable:$true] %s25
      %31 = dma.hbm_to_vmem [thread:$0]  %s24, 256, %s26, [#allocation3], 128, 128, 8
    $region5: #{tpu_custom_call.1} parent=1 // pred_fallthru
      _
    // Predicated region
    $region6: #{tpu_custom_call.1} parent=1 // pred_check
      _
    $region7: #{tpu_custom_call.1} parent=1 // pred_check_branch
      %33 = sbr.rel (0) target = $region9
    $region8: #{tpu_custom_call.1} parent=1 // pred_region
      %s34 = sadd.s32 0, 0
      %p35 = scmp.lt.s32.totalorder %s34, 0
      %s36 = scalar_select %p35, %s34, 0
      %s37 = smul.u32 2, %s36
      %39 = vsyncadd [#allocation6], 0
      %s40 = smul.addr %s37, 8
      %s41 = scalar_lea.hbm %s1, %s40
      %s42 = sshll.u32 %s41, 4
      %s43 = int_to_ptr.hbm [resolvable:$true] %s42
      %s44 = sshll.u32 [#allocation5], 4
      %s45 = int_to_ptr.vmem [resolvable:$true] %s44
      %50 = dma.hbm_to_vmem [thread:$0]  %s43, 256, %s45, [#allocation6], 128, 128, 8
    $region9: #{tpu_custom_call.1} parent=1 // pred_fallthru
      _
    // Predicated region
    $region10: #{tpu_custom_call.1} parent=1 // pred_check
      _
    $region11: #{tpu_custom_call.1} parent=1 // pred_check_branch
      %52 = sbr.rel (0) target = $region13
    $region12: #{tpu_custom_call.1} parent=1 // pred_region
      %54 = dma.done [#allocation3], 256
    $region13: #{tpu_custom_call.1} parent=1 // pred_fallthru
      _
    // Predicated region
    $region14: #{tpu_custom_call.1} parent=1 // pred_check
      _
    $region15: #{tpu_custom_call.1} parent=1 // pred_check_branch
      %56 = sbr.rel (0) target = $region17
    $region16: #{tpu_custom_call.1} parent=1 // pred_region
      %58 = dma.done [#allocation6], 256
    $region17: #{tpu_custom_call.1} parent=1 // pred_fallthru
      _
    %s59 = sadd.s32 0, 0
    %p60 = scmp.lt.s32.totalorder %s59, 0
    %s61 = scalar_select %p60, %s59, 0
    %s62 = smul.u32 2, %s61
    %s63 = sadd.s32 0, 0
    %p64 = scmp.lt.s32.totalorder %s63, 0
    %s65 = scalar_select %p64, %s63, 0
    %s66 = smul.u32 2, %s65
    %p67 = scmp.eq.s32.totalorder 0, 0
    // Predicated region
    $region18: #{tpu_custom_call.1} parent=1 // pred_check
      %p68 = pneg %p67
    $region19: #{tpu_custom_call.1} parent=1 // pred_check_branch
      %70 = sbr.rel (%p68) target = $region21
    $region20: #{tpu_custom_call.1} parent=1 // pred_region
      %71 = vst [vmem:[#allocation7] sm:$0xff] 0.0
      %72 = vst [vmem:[#allocation8] sm:$0xff] 0.0
    $region21: #{tpu_custom_call.1} parent=1 // pred_fallthru
      _
    %v73 = vld [vmem:[#allocation5] sm:$0xff]
    %v74 = vld [vmem:[#allocation5 + $0x8] sm:$0xff]
    %v75 = vld [vmem:[#allocation2] sm:$0xff]
    %v76 = vld [vmem:[#allocation2 + $0x8] sm:$0xff]
    %vm77 = vcmp.gt.f32.partialorder %v73, 0.0
    %vm78 = vcmp.gt.f32.partialorder %v74, 0.0
    %v79 = vsub.f32 %v73, %v75
    %v80 = vsub.f32 %v74, %v76
    %v81 = vsel %vm77, %v79, 0.0
    %v82 = vsel %vm78, %v80, 0.0
    %v83 = vld [vmem:[#allocation7] sm:$0xff]
    %v84 = vmul.f32 %v81, %v81
    %v85 = vmul.f32 %v82, %v82
    %v86 = vadd.f32 %v84, %v85
    %v87 = vadd.f32 %v83, %v86
    %88 = vst [vmem:[#allocation7] sm:$0xff] %v87
    %v89 = vld [vmem:[#allocation8] sm:$0xff]
    %v90 = vsel %vm77, 1.0, 0.0
    %v91 = vsel %vm78, 1.0, 0.0
    %v92 = vadd.f32 %v90, %v91
    %v93 = vadd.f32 %v89, %v92
    %94 = vst [vmem:[#allocation8] sm:$0xff] %v93
    // Predicated region
    $region22: #{tpu_custom_call.1} parent=1 // pred_check
      _
    $region23: #{tpu_custom_call.1} parent=1 // pred_check_branch
      %96 = sbr.rel (0) target = $region25
    $region24: #{tpu_custom_call.1} parent=1 // pred_region
      %98 = vsyncadd [#allocation4], 0
      %s100 = sshll.u32 [#allocation7], 4
      %s101 = int_to_ptr.vmem [resolvable:$true] %s100
      %s102 = sshll.u32 %s2, 4
      %s103 = int_to_ptr.hbm [resolvable:$true] %s102
      %105 = dma.vmem_to_hbm [thread:$0]  %s101, 128, %s103, [#allocation4]
    $region25: #{tpu_custom_call.1} parent=1 // pred_fallthru
      _
    // Predicated region
    $region26: #{tpu_custom_call.1} parent=1 // pred_check
      _
    $region27: #{tpu_custom_call.1} parent=1 // pred_check_branch
      %107 = sbr.rel (0) target = $region29
    $region28: #{tpu_custom_call.1} parent=1 // pred_region
      %109 = vsyncadd [#allocation9], 0
      %s111 = sshll.u32 [#allocation8], 4
      %s112 = int_to_ptr.vmem [resolvable:$true] %s111
      %s113 = sshll.u32 %s3, 4
      %s114 = int_to_ptr.hbm [resolvable:$true] %s113
      %116 = dma.vmem_to_hbm [thread:$0]  %s112, 128, %s114, [#allocation9]
    $region29: #{tpu_custom_call.1} parent=1 // pred_fallthru
      _
    // Predicated region
    $region30: #{tpu_custom_call.1} parent=1 // pred_check
      _
    $region31: #{tpu_custom_call.1} parent=1 // pred_check_branch
      %118 = sbr.rel (0) target = $region33
    $region32: #{tpu_custom_call.1} parent=1 // pred_region
      %120 = dma.done [#allocation4], 128
    $region33: #{tpu_custom_call.1} parent=1 // pred_fallthru
      _
    // Predicated region
    $region34: #{tpu_custom_call.1} parent=1 // pred_check
      _
    $region35: #{tpu_custom_call.1} parent=1 // pred_check_branch
      %122 = sbr.rel (0) target = $region37
    $region36: #{tpu_custom_call.1} parent=1 // pred_region
      %124 = dma.done [#allocation9], 128
    $region37: #{tpu_custom_call.1} parent=1 // pred_fallthru
      _
    %125 = vsyncpa [#allocation3], 1
    %126 = vsyncpa [#allocation6], 1
    %127 = vsyncpa [#allocation4], 1
    %128 = vsyncpa [#allocation9], 1

</llo_original>
